<compile_context>
chip_gen: v6e
topology: v6e:2x2x1
jax: 0.10.0
libtpu: 0.0.40
codegen_flags: <defaults>
</compile_context>

<pallas_src>
import functools
import math

import jax
import jax.numpy as jnp
from jax.experimental import pallas as pl
from jax.experimental.pallas import tpu as pltpu

_LANE = 128
_SUBLANE = 8


def _power_kernel(z_ref, o_ref, *, n: int):
    # z_ref: (TBS, 128) dense block; o_ref: (n, TBS, 128) dense block.
    z = z_ref[...]
    acc_dtype = jnp.float32 if z.dtype.itemsize < 4 else z.dtype
    zc = z.astype(acc_dtype)

    p = zc
    o_ref[0, :, :] = p.astype(o_ref.dtype)          # z ** 1
    for j in range(1, n):                            # n is static -> unrolled
        p = p * zc                                   # z ** (j + 1)
        o_ref[j, :, :] = p.astype(o_ref.dtype)       # full-width unmasked store


def power_layer(z: jax.Array, n: int) -> jax.Array:
    """Pallas equivalent of PowerLayer(n).forward(z) for z of shape (..., 1)."""
    assert z.ndim >= 1 and z.shape[-1] == 1, "expected z with trailing singleton dim"
    lead_shape = z.shape[:-1]
    B = math.prod(lead_shape) if lead_shape else 1
    dtype = z.dtype

    # Flatten batch and pad to a multiple of 8*128 so rows R is a multiple of 8
    # (keeps every block aligned to the (8, 128) vreg tiling).
    pad_unit = _SUBLANE * _LANE
    Bp = pl.cdiv(B, pad_unit) * pad_unit
    zf = z.reshape(B)
    if Bp != B:
        zf = jnp.pad(zf, (0, Bp - B))
    R = Bp // _LANE
    z2 = zf.reshape(R, _LANE)                        # lane-dense input slab

    # Row-tile sized for ~1 MiB output blocks (double-buffered in+out stays
    # well under the 16 MiB v5e / 32 MiB v6e-v7x scoped-VMEM defaults).
    itemsize = jnp.dtype(dtype).itemsize
    tbs = (1 << 20) // max(1, n * _LANE * itemsize)
    tbs = max(_SUBLANE, min(512, (tbs // _SUBLANE) * _SUBLANE))
    tbs = min(tbs, R)
    grid = (pl.cdiv(R, tbs),)

    out3 = pl.pallas_call(
        functools.partial(_power_kernel, n=n),
        out_shape=jax.ShapeDtypeStruct((n, R, _LANE), dtype),
        grid=grid,
        in_specs=[pl.BlockSpec((tbs, _LANE), lambda i: (i, 0))],
        out_specs=pl.BlockSpec((n, tbs, _LANE), lambda i: (0, i, 0)),
        compiler_params=pltpu.CompilerParams(
            dimension_semantics=("parallel",)  # independent tiles -> dual-TC on v7x
        ),
    )(z2)

    # (n, R, 128) -> (R, 128, n) -> (Bp, n) -> trim padding -> (..., n)
    out = jnp.transpose(out3, (1, 2, 0)).reshape(Bp, n)[:B]
    return out.reshape(lead_shape + (n,))


def power_layer_ref(z: jax.Array, n: int) -> jax.Array:
    """Pure-JAX reference: sequential repeated multiplication (matches torch.pow
    with integer exponents, avoids exp/log-pow tolerance artifacts)."""
    B = z.shape[0]
    return jnp.cumprod(jnp.broadcast_to(z, (B, n)), axis=-1)


if __name__ == "__main__":
    key = jax.random.PRNGKey(0)
    B, n = 64, 8
    # Deterministic input; include negatives to exercise integer-pow semantics.
    z = jax.random.normal(key, (B, 1), dtype=jnp.float32)

    out = power_layer(z, n)
    out = jax.block_until_ready(out)

    ref = power_layer_ref(z, n)
    assert out.shape == (B, n), out.shape
    assert jnp.allclose(out, ref, rtol=1e-6, atol=1e-6), "mismatch vs reference"

    print("KERNEL_OK")
</pallas_src>

<mosaic_0001>
module attributes {stable_mosaic.version = 11 : i64} {
  func.func @_power_kernel(%arg0: i32, %arg1: memref<8x128xf32, #tpu.memory_space<vmem>>, %arg2: memref<8x8x128xf32, #tpu.memory_space<vmem>>) attributes {dimension_semantics = [#tpu.dimension_semantics<parallel>], iteration_bounds = array<i64: 1>, scalar_prefetch = 0 : i64, scratch_operands = 0 : i64, tpu.core_type = #tpu.core_type<tc>, window_params = [{transform_indices = @transform_0, window_bounds = array<i64: 8, 128>}, {transform_indices = @transform_1, window_bounds = array<i64: 8, 8, 128>}]} {
    %c0 = arith.constant 0 : index
    %c0_0 = arith.constant 0 : index
    %0 = vector.load %arg1[%c0, %c0_0] : memref<8x128xf32, #tpu.memory_space<vmem>>, vector<8x128xf32>
    %c0_1 = arith.constant 0 : index
    %c0_2 = arith.constant 0 : index
    %c0_3 = arith.constant 0 : index
    %1 = vector.load %arg2[%c0_1, %c0_2, %c0_3] : memref<8x8x128xf32, #tpu.memory_space<vmem>>, vector<1x8x128xf32>
    %2 = vector.shape_cast %1 : vector<1x8x128xf32> to vector<8x128xf32>
    %3 = vector.shape_cast %0 : vector<8x128xf32> to vector<1x8x128xf32>
    tpu.vector_store %arg2[%c0_1, %c0_2, %c0_3], %3 {strides = array<i32>} : memref<8x8x128xf32, #tpu.memory_space<vmem>>, vector<1x8x128xf32>,
    %4 = arith.mulf %0, %0 : vector<8x128xf32>
    %c1 = arith.constant 1 : index
    %c0_4 = arith.constant 0 : index
    %c0_5 = arith.constant 0 : index
    %5 = vector.load %arg2[%c1, %c0_4, %c0_5] : memref<8x8x128xf32, #tpu.memory_space<vmem>>, vector<1x8x128xf32>
    %6 = vector.shape_cast %5 : vector<1x8x128xf32> to vector<8x128xf32>
    %7 = vector.shape_cast %4 : vector<8x128xf32> to vector<1x8x128xf32>
    tpu.vector_store %arg2[%c1, %c0_4, %c0_5], %7 {strides = array<i32>} : memref<8x8x128xf32, #tpu.memory_space<vmem>>, vector<1x8x128xf32>,
    %8 = arith.mulf %4, %0 : vector<8x128xf32>
    %c2 = arith.constant 2 : index
    %c0_6 = arith.constant 0 : index
    %c0_7 = arith.constant 0 : index
    %9 = vector.load %arg2[%c2, %c0_6, %c0_7] : memref<8x8x128xf32, #tpu.memory_space<vmem>>, vector<1x8x128xf32>
    %10 = vector.shape_cast %9 : vector<1x8x128xf32> to vector<8x128xf32>
    %11 = vector.shape_cast %8 : vector<8x128xf32> to vector<1x8x128xf32>
    tpu.vector_store %arg2[%c2, %c0_6, %c0_7], %11 {strides = array<i32>} : memref<8x8x128xf32, #tpu.memory_space<vmem>>, vector<1x8x128xf32>,
    %12 = arith.mulf %8, %0 : vector<8x128xf32>
    %c3 = arith.constant 3 : index
    %c0_8 = arith.constant 0 : index
    %c0_9 = arith.constant 0 : index
    %13 = vector.load %arg2[%c3, %c0_8, %c0_9] : memref<8x8x128xf32, #tpu.memory_space<vmem>>, vector<1x8x128xf32>
    %14 = vector.shape_cast %13 : vector<1x8x128xf32> to vector<8x128xf32>
    %15 = vector.shape_cast %12 : vector<8x128xf32> to vector<1x8x128xf32>
    tpu.vector_store %arg2[%c3, %c0_8, %c0_9], %15 {strides = array<i32>} : memref<8x8x128xf32, #tpu.memory_space<vmem>>, vector<1x8x128xf32>,
    %16 = arith.mulf %12, %0 : vector<8x128xf32>
    %c4 = arith.constant 4 : index
    %c0_10 = arith.constant 0 : index
    %c0_11 = arith.constant 0 : index
    %17 = vector.load %arg2[%c4, %c0_10, %c0_11] : memref<8x8x128xf32, #tpu.memory_space<vmem>>, vector<1x8x128xf32>
    %18 = vector.shape_cast %17 : vector<1x8x128xf32> to vector<8x128xf32>
    %19 = vector.shape_cast %16 : vector<8x128xf32> to vector<1x8x128xf32>
    tpu.vector_store %arg2[%c4, %c0_10, %c0_11], %19 {strides = array<i32>} : memref<8x8x128xf32, #tpu.memory_space<vmem>>, vector<1x8x128xf32>,
    %20 = arith.mulf %16, %0 : vector<8x128xf32>
    %c5 = arith.constant 5 : index
    %c0_12 = arith.constant 0 : index
    %c0_13 = arith.constant 0 : index
    %21 = vector.load %arg2[%c5, %c0_12, %c0_13] : memref<8x8x128xf32, #tpu.memory_space<vmem>>, vector<1x8x128xf32>
    %22 = vector.shape_cast %21 : vector<1x8x128xf32> to vector<8x128xf32>
    %23 = vector.shape_cast %20 : vector<8x128xf32> to vector<1x8x128xf32>
    tpu.vector_store %arg2[%c5, %c0_12, %c0_13], %23 {strides = array<i32>} : memref<8x8x128xf32, #tpu.memory_space<vmem>>, vector<1x8x128xf32>,
    %24 = arith.mulf %20, %0 : vector<8x128xf32>
    %c6 = arith.constant 6 : index
    %c0_14 = arith.constant 0 : index
    %c0_15 = arith.constant 0 : index
    %25 = vector.load %arg2[%c6, %c0_14, %c0_15] : memref<8x8x128xf32, #tpu.memory_space<vmem>>, vector<1x8x128xf32>
    %26 = vector.shape_cast %25 : vector<1x8x128xf32> to vector<8x128xf32>
    %27 = vector.shape_cast %24 : vector<8x128xf32> to vector<1x8x128xf32>
    tpu.vector_store %arg2[%c6, %c0_14, %c0_15], %27 {strides = array<i32>} : memref<8x8x128xf32, #tpu.memory_space<vmem>>, vector<1x8x128xf32>,
    %28 = arith.mulf %24, %0 : vector<8x128xf32>
    %c7 = arith.constant 7 : index
    %c0_16 = arith.constant 0 : index
    %c0_17 = arith.constant 0 : index
    %29 = vector.load %arg2[%c7, %c0_16, %c0_17] : memref<8x8x128xf32, #tpu.memory_space<vmem>>, vector<1x8x128xf32>
    %30 = vector.shape_cast %29 : vector<1x8x128xf32> to vector<8x128xf32>
    %31 = vector.shape_cast %28 : vector<8x128xf32> to vector<1x8x128xf32>
    tpu.vector_store %arg2[%c7, %c0_16, %c0_17], %31 {strides = array<i32>} : memref<8x8x128xf32, #tpu.memory_space<vmem>>, vector<1x8x128xf32>,
    return
  }
  func.func @transform_0(%arg0: i32) -> (i32, i32) {
    %c0_i32 = arith.constant 0 : i32
    %c0_i32_0 = arith.constant 0 : i32
    return %arg0, %c0_i32 : i32, i32
  }
  func.func @transform_1(%arg0: i32) -> (i32, i32, i32) {
    %c0_i32 = arith.constant 0 : i32
    %c0_i32_0 = arith.constant 0 : i32
    %c0_i32_1 = arith.constant 0 : i32
    return %c0_i32, %arg0, %c0_i32_0 : i32, i32, i32
  }
}

</mosaic_0001>

<llo_original>
// kernel: tpu_custom_call.1
$region0: #{tpu_custom_call.1}
  #allocation0 [shape = 'u32[]', space=smem, size = 0x4, offset = 0x4, fixed_abs, tag = 'smem constant byte address 0x4 - core index']
  #allocation1 [shape = 'u32[144,128]{1,0:T(1,128)}', space=vmem, size = 0x12000, scoped, tag = 'internal scratch']
  %s0 = inlined_call_operand.hbm [shape: f32[8,128], index: 0, kind: input, shape index: {}]
  %s1 = inlined_call_operand.hbm [shape: f32[8,8,128], index: 1, kind: output, shape index: {}]
  %s2 = sld [smem:[#allocation0]]
  $region18: #{tpu_custom_call.1} parent=0
    _
  %s4 = ssub.s32 1, %s2
  %s5 = scalar_select 0, %s4, %s2
  $region1: #{tpu_custom_call.1} parent=0
    #allocation2 [shape = 'u8[4096]{0}', space=vmem, size = 0x1000, scoped, tag = 'input window, operand 0, single buffered']
    #allocation3 [shape = 's32[1]{0}', space=sflag, size = 0x4, scoped, tag = 'scoped memory for tpu_custom_call.1']
    #allocation4 [shape = 's32[1]{0}', space=sflag, size = 0x4, scoped, tag = 'scoped memory for tpu_custom_call.1']
    #allocation5 [shape = 'u8[32768]{0}', space=vmem, size = 0x8000, scoped, tag = 'output window, operand 0, single buffered']
    %6 = vsyncpa [#allocation3], 0
    %7 = vsyncpa [#allocation4], 0
    // Predicated region
    $region2: #{tpu_custom_call.1} parent=1 // pred_check
      _
    $region3: #{tpu_custom_call.1} parent=1 // pred_check_branch
      %9 = sbr.rel (0) target = $region5
    $region4: #{tpu_custom_call.1} parent=1 // pred_region
      %s11 = ssub.s32 128, 128
      %12 = vsyncadd [#allocation3], %s11
      %s14 = sshll.u32 [#allocation2], 4
      %s15 = int_to_ptr.vmem [resolvable:$true] %s14
      %17 = dma.hbm_to_vmem [thread:$0]  %s0, 128, %s15, [#allocation3]
    $region5: #{tpu_custom_call.1} parent=1 // pred_fallthru
      _
    // Predicated region
    $region6: #{tpu_custom_call.1} parent=1 // pred_check
      _
    $region7: #{tpu_custom_call.1} parent=1 // pred_check_branch
      %19 = sbr.rel (0) target = $region9
    $region8: #{tpu_custom_call.1} parent=1 // pred_region
      %20 = dma.done [#allocation3], 128
    $region9: #{tpu_custom_call.1} parent=1 // pred_fallthru
      _
    %v21 = vld [vmem:[#allocation2] sm:$0xff]
    %22 = vst [vmem:[#allocation5] sm:$0xff] %v21
    %v23 = vmul.f32 %v21, %v21
    %s24 = scalar_lea.vmem [#allocation5], 8
    %25 = vst [vmem:[%s24] sm:$0xff] %v23
    %v26 = vmul.f32 %v23, %v21
    %s27 = scalar_lea.vmem [#allocation5], 16
    %28 = vst [vmem:[%s27] sm:$0xff] %v26
    %v29 = vmul.f32 %v26, %v21
    %s30 = scalar_lea.vmem [#allocation5], 24
    %31 = vst [vmem:[%s30] sm:$0xff] %v29
    %v32 = vmul.f32 %v29, %v21
    %s33 = scalar_lea.vmem [#allocation5], 32
    %34 = vst [vmem:[%s33] sm:$0xff] %v32
    %v35 = vmul.f32 %v32, %v21
    %s36 = scalar_lea.vmem [#allocation5], 40
    %37 = vst [vmem:[%s36] sm:$0xff] %v35
    %v38 = vmul.f32 %v35, %v21
    %s39 = scalar_lea.vmem [#allocation5], 48
    %40 = vst [vmem:[%s39] sm:$0xff] %v38
    %v41 = vmul.f32 %v38, %v21
    %s42 = scalar_lea.vmem [#allocation5], 56
    %43 = vst [vmem:[%s42] sm:$0xff] %v41
    // Predicated region
    $region10: #{tpu_custom_call.1} parent=1 // pred_check
      _
    $region11: #{tpu_custom_call.1} parent=1 // pred_check_branch
      %45 = sbr.rel (0) target = $region13
    $region12: #{tpu_custom_call.1} parent=1 // pred_region
      %s47 = ssub.s32 1024, 1024
      %48 = vsyncadd [#allocation4], %s47
      %s49 = sshll.u32 [#allocation5], 4
      %s50 = int_to_ptr.vmem [resolvable:$true] %s49
      %55 = dma.vmem_to_hbm [thread:$0]  %s50, 1024, %s1, [#allocation4], 128, 128, 8
    $region13: #{tpu_custom_call.1} parent=1 // pred_fallthru
      _
    // Predicated region
    $region14: #{tpu_custom_call.1} parent=1 // pred_check
      _
    $region15: #{tpu_custom_call.1} parent=1 // pred_check_branch
      %57 = sbr.rel (0) target = $region17
    $region16: #{tpu_custom_call.1} parent=1 // pred_region
      %58 = dma.done [#allocation4], 1024
    $region17: #{tpu_custom_call.1} parent=1 // pred_fallthru
      _
    %59 = vsyncpa [#allocation3], 1
    %60 = vsyncpa [#allocation4], 1

</llo_original>
